<compile_context>
chip_gen: v6e
topology: v6e:2x2x1
jax: 0.10.0
libtpu: 0.0.40
codegen_flags: <defaults>
</compile_context>

<pallas_src>
import functools

import jax
import jax.numpy as jnp
from jax.experimental import pallas as pl
from jax.experimental.pallas import tpu as pltpu

_SUB = 8     # sublane depth of the halo block (must be >= attention_width)
_LANE = 128  # lane width


def attention_kernel(x_ref, halo_ref, w_ref, p_ref, o_ref, *,
                     attention_width, tile_s):
    # x_ref:    (TS, Hp)  current sequence tile
    # halo_ref: (8,  Hp)  last 8 rows of the previous tile (clamped for tile 0;
    #                     its contribution is masked out there)
    # w_ref:    (Hp, Hp)  lane-padded weight_W (resident across the grid)
    # p_ref:    (1,  Hp)  lane-padded weight_proj as a row
    # o_ref:    (TS, Hp)
    aw = attention_width
    ts = tile_s
    hd = halo_ref.shape[0]              # halo depth (8)
    t = pl.program_id(0)

    x = x_ref[...]
    halo = halo_ref[...]
    w = w_ref[...]
    p = p_ref[...]

    # Hot path: tanh(x @ W) on the MXU; projection as VPU multiply + XLU lane
    # reduce instead of an N=1 matmul.  (The last row's score is technically
    # dead — no window ever references it — but not worth special-casing.)
    u = jnp.tanh(jnp.dot(x, w, preferred_element_type=jnp.float32))       # (TS, Hp)
    s = jnp.sum(u * p, axis=-1, keepdims=True)                            # (TS, 1)
    u_h = jnp.tanh(jnp.dot(halo, w, preferred_element_type=jnp.float32))  # (8, Hp)
    s_h = jnp.sum(u_h * p, axis=-1, keepdims=True)                        # (8, 1)

    # Extended tile: ext_*[j] holds global row (t*TS + j - hd).
    ext_x = jnp.concatenate([halo, x], axis=0)                            # (TS+8, Hp)
    ext_s = jnp.concatenate([s_h, s], axis=0)                             # (TS+8, 1)

    # Shifted views: row r of the k-th view is global row (t*TS + r - k),
    # i.e. window element (aw - k) of the window for output row r.
    xks = [ext_x[hd - k: hd - k + ts, :] for k in range(1, aw + 1)]
    sks = [ext_s[hd - k: hd - k + ts, :] for k in range(1, aw + 1)]

    win_sum = xks[0]
    for xk in xks[1:]:
        win_sum = win_sum + xk                                            # (TS, Hp)

    m = sks[0]
    for sk in sks[1:]:
        m = jnp.maximum(m, sk)                                            # (TS, 1)
    denom = jnp.exp(sks[0] - m)
    for sk in sks[1:]:
        denom = denom + jnp.exp(sk - m)                                   # (TS, 1)

    # Only a[0] of each window is used (PyTorch broadcast quirk); a[0] is the
    # softmax weight of row i-aw, which is the k == aw shifted view.
    a0 = jnp.exp(sks[-1] - m) * pl.reciprocal(denom, approx=True)         # (TS, 1)

    att = a0 * win_sum                                                    # (TS, Hp)

    # Single lane/sublane-dense full-block store; global rows < aw pass through.
    row = jax.lax.broadcasted_iota(jnp.int32, x.shape, 0) + t * ts
    o_ref[...] = jnp.where(row < aw, x, att)


def attention_layer(inputs, weight_W, weight_proj, attention_width=3, tile_s=32):
    """inputs: (1, S, H) f32 -> (1, S, H) f32."""
    assert inputs.shape[0] == 1, "reference module only supports batch=1"
    assert 1 <= attention_width <= _SUB, "halo depth supports attention_width <= 8"
    _, S, H = inputs.shape

    # Lane-pad H and sublane/tile-pad S so every block is (8,128)-dense.
    Hp = ((H + _LANE - 1) // _LANE) * _LANE
    tile_s = max(_SUB, (tile_s // _SUB) * _SUB)
    Sp = ((S + tile_s - 1) // tile_s) * tile_s
    n_tiles = Sp // tile_s
    halo_blocks_per_tile = tile_s // _SUB

    x = inputs[0].astype(jnp.float32)
    xp = jnp.zeros((Sp, Hp), jnp.float32).at[:S, :H].set(x)
    wp = jnp.zeros((Hp, Hp), jnp.float32).at[:H, :H].set(weight_W.astype(jnp.float32))
    pp = jnp.zeros((1, Hp), jnp.float32).at[0, :H].set(
        weight_proj.astype(jnp.float32)[:, 0])

    kernel = functools.partial(attention_kernel,
                               attention_width=attention_width, tile_s=tile_s)

    out = pl.pallas_call(
        kernel,
        out_shape=jax.ShapeDtypeStruct((Sp, Hp), jnp.float32),
        grid=(n_tiles,),
        in_specs=[
            # current tile
            pl.BlockSpec((tile_s, Hp), lambda t: (t, 0)),
            # 8-row halo: the last 8 rows of the previous tile (block index
            # clamped to 0 for tile 0, where its contribution is masked out).
            pl.BlockSpec((_SUB, Hp),
                         lambda t: (jnp.maximum(t * halo_blocks_per_tile - 1, 0), 0)),
            # resident weights (constant index map -> no re-DMA per tile;
            # could additionally be single-buffered via pipeline_mode).
            pl.BlockSpec((Hp, Hp), lambda t: (0, 0)),
            pl.BlockSpec((1, Hp), lambda t: (0, 0)),
        ],
        out_specs=pl.BlockSpec((tile_s, Hp), lambda t: (t, 0)),
        compiler_params=pltpu.CompilerParams(
            # No cross-tile carry (halo is fetched, not carried), so the S axis
            # can shard across the two TensorCores on v7x.
            dimension_semantics=("parallel",),
            vmem_limit_bytes=32 * 1024 * 1024,
        ),
    )(xp, xp, wp, pp)

    return out[:S, :H][None]


def attention_layer_ref(inputs, weight_W, weight_proj, attention_width=3):
    """Pure-JAX reference mirroring the PyTorch forward (batch=1)."""
    _, S, _ = inputs.shape
    x = inputs[0]
    outs = []
    for i in range(S):
        if i < attention_width:
            outs.append(x[i])
        else:
            vec = x[i - attention_width:i]
            u = jnp.tanh(vec @ weight_W)
            a = jax.nn.softmax(u @ weight_proj[:, 0])
            outs.append(a[0] * jnp.sum(vec, axis=0))
    return jnp.stack(outs)[None]


if __name__ == "__main__":
    B, S, H, AW = 1, 64, 32, 3          # batch must be 1 (see header note)
    key = jax.random.PRNGKey(0)
    k_x, k_w, k_p = jax.random.split(key, 3)

    inputs = jax.random.normal(k_x, (B, S, H), dtype=jnp.float32)
    # nn.Parameter(...).data.uniform_(-0.1, 0.1)
    weight_W = jax.random.uniform(k_w, (H, H), minval=-0.1, maxval=0.1,
                                  dtype=jnp.float32)
    weight_proj = jax.random.uniform(k_p, (H, 1), minval=-0.1, maxval=0.1,
                                     dtype=jnp.float32)

    out = attention_layer(inputs, weight_W, weight_proj, attention_width=AW)
    out = jax.block_until_ready(out)

    ref = attention_layer_ref(inputs, weight_W, weight_proj, attention_width=AW)
    assert out.shape == (B, S, H)
    # tolerance loosened slightly for the approximate (EUP) reciprocal
    assert jnp.allclose(out, ref, atol=2e-3, rtol=2e-3), (
        "mismatch vs reference, max abs diff = "
        f"{float(jnp.max(jnp.abs(out - ref))):.3e}")

    print("KERNEL_OK")
</pallas_src>

<mosaic_0001>
module attributes {stable_mosaic.version = 11 : i64} {
  func.func @attention_kernel(%arg0: i32, %arg1: memref<32x128xf32, #tpu.memory_space<vmem>>, %arg2: memref<8x128xf32, #tpu.memory_space<vmem>>, %arg3: memref<128x128xf32, #tpu.memory_space<vmem>>, %arg4: memref<1x128xf32, #tpu.memory_space<vmem>>, %arg5: memref<32x128xf32, #tpu.memory_space<vmem>>) attributes {dimension_semantics = [#tpu.dimension_semantics<parallel>], iteration_bounds = array<i64: 2>, scalar_prefetch = 0 : i64, scratch_operands = 0 : i64, tpu.core_type = #tpu.core_type<tc>, window_params = [{transform_indices = @transform_0, window_bounds = array<i64: 32, 128>}, {transform_indices = @transform_1, window_bounds = array<i64: 8, 128>}, {pipeline_mode = #tpu.pipeline_mode<synchronous>, transform_indices = @transform_2, window_bounds = array<i64: 128, 128>}, {pipeline_mode = #tpu.pipeline_mode<synchronous>, transform_indices = @transform_3, window_bounds = array<i64: 1, 128>}, {transform_indices = @transform_4, window_bounds = array<i64: 32, 128>}]} {
    %c0 = arith.constant 0 : index
    %c0_0 = arith.constant 0 : index
    %0 = vector.load %arg1[%c0, %c0_0] : memref<32x128xf32, #tpu.memory_space<vmem>>, vector<32x128xf32>
    %c0_1 = arith.constant 0 : index
    %c0_2 = arith.constant 0 : index
    %1 = vector.load %arg2[%c0_1, %c0_2] : memref<8x128xf32, #tpu.memory_space<vmem>>, vector<8x128xf32>
    %c0_3 = arith.constant 0 : index
    %c0_4 = arith.constant 0 : index
    %2 = vector.load %arg3[%c0_3, %c0_4] : memref<128x128xf32, #tpu.memory_space<vmem>>, vector<128x128xf32>
    %c0_5 = arith.constant 0 : index
    %c0_6 = arith.constant 0 : index
    %3 = vector.load %arg4[%c0_5, %c0_6] : memref<1x128xf32, #tpu.memory_space<vmem>>, vector<1x128xf32>
    %cst = arith.constant dense<0.000000e+00> : vector<32x128xf32>
    %4 = tpu.matmul %0, %2, %cst {dimension_numbers = #tpu.dot_dimension_numbers<[1], [0], [0], [1], [0, 0, 1, 1], [], []>} : vector<32x128xf32>, vector<128x128xf32>, vector<32x128xf32> -> vector<32x128xf32>
    %5 = math.tanh %4 : vector<32x128xf32>
    %6 = vector.broadcast %3 : vector<1x128xf32> to vector<32x128xf32>
    %7 = arith.mulf %5, %6 : vector<32x128xf32>
    %cst_7 = arith.constant dense<0.000000e+00> : vector<32xf32>
    %8 = vector.multi_reduction <add>, %7, %cst_7 [1] : vector<32x128xf32> to vector<32xf32>
    %9 = vector.shape_cast %8 : vector<32xf32> to vector<32x1xf32>
    %cst_8 = arith.constant dense<0.000000e+00> : vector<8x128xf32>
    %10 = tpu.matmul %1, %2, %cst_8 {dimension_numbers = #tpu.dot_dimension_numbers<[1], [0], [0], [1], [0, 0, 1, 1], [], []>} : vector<8x128xf32>, vector<128x128xf32>, vector<8x128xf32> -> vector<8x128xf32>
    %11 = math.tanh %10 : vector<8x128xf32>
    %12 = vector.broadcast %3 : vector<1x128xf32> to vector<8x128xf32>
    %13 = arith.mulf %11, %12 : vector<8x128xf32>
    %cst_9 = arith.constant dense<0.000000e+00> : vector<8xf32>
    %14 = vector.multi_reduction <add>, %13, %cst_9 [1] : vector<8x128xf32> to vector<8xf32>
    %15 = vector.shape_cast %14 : vector<8xf32> to vector<8x1xf32>
    %16 = tpu.concatenate %1, %0 in 0 : vector<8x128xf32>, vector<32x128xf32> -> vector<40x128xf32>
    %17 = tpu.concatenate %15, %9 in 0 : vector<8x1xf32>, vector<32x1xf32> -> vector<40x1xf32>
    %18 = vector.extract_strided_slice %16 {offsets = [7, 0], sizes = [32, 128], strides = [1, 1]} : vector<40x128xf32> to vector<32x128xf32>
    %19 = vector.extract_strided_slice %16 {offsets = [6, 0], sizes = [32, 128], strides = [1, 1]} : vector<40x128xf32> to vector<32x128xf32>
    %20 = vector.extract_strided_slice %16 {offsets = [5, 0], sizes = [32, 128], strides = [1, 1]} : vector<40x128xf32> to vector<32x128xf32>
    %21 = vector.extract_strided_slice %17 {offsets = [7, 0], sizes = [32, 1], strides = [1, 1]} : vector<40x1xf32> to vector<32x1xf32>
    %22 = vector.extract_strided_slice %17 {offsets = [6, 0], sizes = [32, 1], strides = [1, 1]} : vector<40x1xf32> to vector<32x1xf32>
    %23 = vector.extract_strided_slice %17 {offsets = [5, 0], sizes = [32, 1], strides = [1, 1]} : vector<40x1xf32> to vector<32x1xf32>
    %24 = arith.addf %18, %19 : vector<32x128xf32>
    %25 = arith.addf %24, %20 : vector<32x128xf32>
    %26 = arith.maximumf %21, %22 : vector<32x1xf32>
    %27 = arith.maximumf %26, %23 : vector<32x1xf32>
    %28 = arith.subf %21, %27 : vector<32x1xf32>
    %29 = math.exp %28 : vector<32x1xf32>
    %30 = arith.subf %22, %27 : vector<32x1xf32>
    %31 = math.exp %30 : vector<32x1xf32>
    %32 = arith.addf %29, %31 : vector<32x1xf32>
    %33 = arith.subf %23, %27 : vector<32x1xf32>
    %34 = math.exp %33 : vector<32x1xf32>
    %35 = arith.addf %32, %34 : vector<32x1xf32>
    %36 = arith.subf %23, %27 : vector<32x1xf32>
    %37 = math.exp %36 : vector<32x1xf32>
    %38 = tpu.reciprocal %35 {approx = true} : vector<32x1xf32> -> vector<32x1xf32>
    %39 = arith.mulf %37, %38 : vector<32x1xf32>
    %40 = vector.broadcast %39 : vector<32x1xf32> to vector<32x128xf32>
    %41 = arith.mulf %40, %25 : vector<32x128xf32>
    %42 = tpu.iota {dimensions = array<i32: 0>} : vector<32x128xi32>
    %c32_i32 = arith.constant 32 : i32
    %43 = arith.muli %arg0, %c32_i32 : i32
    %44 = vector.broadcast %43 : i32 to vector<32x128xi32>
    %45 = arith.addi %42, %44 : vector<32x128xi32>
    %c3_i32 = arith.constant 3 : i32
    %46 = vector.broadcast %c3_i32 : i32 to vector<32x128xi32>
    %47 = arith.cmpi slt, %45, %46 : vector<32x128xi32>
    %48 = arith.select %47, %0, %41 : vector<32x128xi1>, vector<32x128xf32>
    %c0_10 = arith.constant 0 : index
    %c0_11 = arith.constant 0 : index
    %49 = vector.load %arg5[%c0_10, %c0_11] : memref<32x128xf32, #tpu.memory_space<vmem>>, vector<32x128xf32>
    tpu.vector_store %arg5[%c0_10, %c0_11], %48 {strides = array<i32>} : memref<32x128xf32, #tpu.memory_space<vmem>>, vector<32x128xf32>,
    return
  }
  func.func @transform_0(%arg0: i32) -> (i32, i32) {
    %c0_i32 = arith.constant 0 : i32
    %c0_i32_0 = arith.constant 0 : i32
    return %arg0, %c0_i32 : i32, i32
  }
  func.func @transform_1(%arg0: i32) -> (i32, i32) {
    %c4_i32 = arith.constant 4 : i32
    %0 = arith.muli %arg0, %c4_i32 : i32
    %c1_i32 = arith.constant 1 : i32
    %1 = arith.subi %0, %c1_i32 : i32
    %c0_i32 = arith.constant 0 : i32
    %2 = arith.maxsi %1, %c0_i32 : i32
    %c0_i32_0 = arith.constant 0 : i32
    %c0_i32_1 = arith.constant 0 : i32
    return %2, %c0_i32_0 : i32, i32
  }
  func.func @transform_2(%arg0: i32) -> (i32, i32) {
    %c0_i32 = arith.constant 0 : i32
    %c0_i32_0 = arith.constant 0 : i32
    %c0_i32_1 = arith.constant 0 : i32
    return %c0_i32, %c0_i32_0 : i32, i32
  }
  func.func @transform_3(%arg0: i32) -> (i32, i32) {
    %c0_i32 = arith.constant 0 : i32
    %c0_i32_0 = arith.constant 0 : i32
    %c0_i32_1 = arith.constant 0 : i32
    return %c0_i32, %c0_i32_0 : i32, i32
  }
  func.func @transform_4(%arg0: i32) -> (i32, i32) {
    %c0_i32 = arith.constant 0 : i32
    %c0_i32_0 = arith.constant 0 : i32
    return %arg0, %c0_i32 : i32, i32
  }
}

</mosaic_0001>

<llo_original>
// kernel: tpu_custom_call.1
$region0: #{tpu_custom_call.1}
  #allocation0 [shape = 'u32[]', space=smem, size = 0x4, offset = 0x4, fixed_abs, tag = 'smem constant byte address 0x4 - core index']
  #allocation1 [shape = 'u32[144,128]{1,0:T(1,128)}', space=vmem, size = 0x12000, scoped, tag = 'internal scratch']
  %s0 = inlined_call_operand.hbm [shape: f32[64,128], index: 0, kind: input, shape index: {}]
  %s1 = inlined_call_operand.hbm [shape: f32[64,128], index: 1, kind: input, shape index: {}]
  %s2 = inlined_call_operand.hbm [shape: f32[128,128], index: 2, kind: input, shape index: {}]
  %s3 = inlined_call_operand.vmem [shape: f32[1,128], index: 3, kind: input, shape index: {}]
  %s4 = inlined_call_operand.hbm [shape: f32[64,128], index: 4, kind: output, shape index: {}]
  %s5 = sld [smem:[#allocation0]]
  $region61: #{tpu_custom_call.1} parent=0
    _
  %s7 = ssub.s32 1, %s5
  %s8 = scalar_select 0, %s7, %s5
  $region1: #{tpu_custom_call.1} parent=0
    #allocation2 [shape = 'u8[32768]{0}', space=vmem, size = 0x8000, scoped, tag = 'input window, operand 0']
    #allocation3 [shape = 's32[2]{0}', space=sflag, size = 0x8, scoped, tag = 'scoped memory for tpu_custom_call.1']
    #allocation4 [shape = 's32[2]{0}', space=sflag, size = 0x8, scoped, tag = 'scoped memory for tpu_custom_call.1']
    #allocation5 [shape = 'u8[8192]{0}', space=vmem, size = 0x2000, scoped, tag = 'input window, operand 1']
    #allocation6 [shape = 's32[2]{0}', space=sflag, size = 0x8, scoped, tag = 'scoped memory for tpu_custom_call.1']
    #allocation7 [shape = 'u8[65536]{0}', space=vmem, size = 0x10000, scoped, tag = 'input window, operand 2, single buffered']
    #allocation8 [shape = 'u8[32768]{0}', space=vmem, size = 0x8000, scoped, tag = 'output window, operand 0']
    %9 = vsyncpa [#allocation3], 0
    %s10 = scalar_lea.sflag [#allocation3], 1
    %11 = vsyncpa %s10, 0
    %12 = vsyncpa [#allocation6], 0
    %s13 = scalar_lea.sflag [#allocation6], 1
    %14 = vsyncpa %s13, 0
    %15 = vsyncpa [#allocation4], 0
    %s16 = scalar_lea.sflag [#allocation4], 1
    %17 = vsyncpa %s16, 0
    loop: start=0, step=1, limit=4
    $region2: #{tpu_custom_call.1} parent=1 // loop_pre_header
      _
    $region3: #{tpu_custom_call.1} parent=1 // loop_header
      %s19 = sphi 0, %s23
      %p20 = scmp.ge.s32.totalorder %s19, 4
      %s29 = sphi 0, %s31
      %s32 = sphi 0, %s29
      %s33 = sphi 0, %s32
      %s49 = sphi 0, %s33
      %s63 = sphi 0, %s65
      %s66 = sphi 0, %s63
      %s67 = sphi 0, %s66
      %s83 = sphi 0, %s67
      %s87 = sphi 0, %s87
      %s89 = sphi 0, %s87
      %s90 = sphi 0, %s89
      %s104 = sphi 0, %s90
      %s108 = sphi 0, %s108
      %s110 = sphi 0, %s108
      %s111 = sphi 0, %s110
      %s125 = sphi 0, %s111
      %s131 = sphi 0, %s133
      %s134 = sphi 0, %s131
      %s135 = sphi 0, %s134
      %s151 = sphi 0, %s135
    $region4: #{tpu_custom_call.1} parent=1 // loop_header_branch
      %22 = sbr.rel (%p20) target = $region8
    $region5: #{tpu_custom_call.1} parent=1 // loop_body
      %s24 = ssub.s32 %s19, 1
      %s25 = ssub.s32 %s19, 2
      %s26 = sadd.s32 %s19, 1
      %s27 = ssub.s32 %s19, %s26
      %p28 = scmp.eq.s32.totalorder %s27, 0
      %s30 = sadd.s32 %s29, 1
      %s31 = scalar_select %p28, %s29, %s30
      %p34 = pneg %p28
      %p35 = scmp.eq.s32.totalorder %s19, 1
      %p36 = por %p34, %p35
      %p37 = scmp.ne.s32.totalorder %s29, %s32
      %p38 = scmp.eq.s32.totalorder %s19, 0
      %p39 = por %p37, %p38
      %p40 = scmp.ne.s32.totalorder %s29, %s32
      %p41 = scmp.eq.s32.totalorder %s24, 1
      %p42 = por %p40, %p41
      %p43 = scmp.ne.s32.totalorder %s32, %s33
      %p44 = scmp.eq.s32.totalorder %s24, 0
      %p45 = por %p43, %p44
      %p46 = scmp.ne.s32.totalorder %s32, %s33
      %p47 = scmp.eq.s32.totalorder %s25, 1
      %p48 = por %p46, %p47
      %p50 = scmp.ne.s32.totalorder %s33, %s49
      %p51 = scmp.eq.s32.totalorder %s25, 0
      %p52 = por %p50, %p51
      %s53 = smul.u32 %s19, 4
      %s54 = ssub.s32 %s53, 1
      %p55 = scmp.gt.s32.totalorder %s54, 0
      %s56 = scalar_select %p55, %s54, 0
      %s57 = smul.u32 %s26, 4
      %s58 = ssub.s32 %s57, 1
      %p59 = scmp.gt.s32.totalorder %s58, 0
      %s60 = scalar_select %p59, %s58, 0
      %s61 = ssub.s32 %s56, %s60
      %p62 = scmp.eq.s32.totalorder %s61, 0
      %s64 = sadd.s32 %s63, 1
      %s65 = scalar_select %p62, %s63, %s64
      %p68 = pneg %p62
      %p69 = scmp.eq.s32.totalorder %s19, 1
      %p70 = por %p68, %p69
      %p71 = scmp.ne.s32.totalorder %s63, %s66
      %p72 = scmp.eq.s32.totalorder %s19, 0
      %p73 = por %p71, %p72
      %p74 = scmp.ne.s32.totalorder %s63, %s66
      %p75 = scmp.eq.s32.totalorder %s24, 1
      %p76 = por %p74, %p75
      %p77 = scmp.ne.s32.totalorder %s66, %s67
      %p78 = scmp.eq.s32.totalorder %s24, 0
      %p79 = por %p77, %p78
      %p80 = scmp.ne.s32.totalorder %s66, %s67
      %p81 = scmp.eq.s32.totalorder %s25, 1
      %p82 = por %p80, %p81
      %p84 = scmp.ne.s32.totalorder %s67, %s83
      %p85 = scmp.eq.s32.totalorder %s25, 0
      %p86 = por %p84, %p85
      %s88 = sadd.s32 %s87, 1
      %p91 = scmp.eq.s32.totalorder %s19, 1
      %p92 = scmp.ne.s32.totalorder %s87, %s89
      %p93 = scmp.eq.s32.totalorder %s19, 0
      %p94 = por %p92, %p93
      %p95 = scmp.ne.s32.totalorder %s87, %s89
      %p96 = scmp.eq.s32.totalorder %s24, 1
      %p97 = por %p95, %p96
      %p98 = scmp.ne.s32.totalorder %s89, %s90
      %p99 = scmp.eq.s32.totalorder %s24, 0
      %p100 = por %p98, %p99
      %p101 = scmp.ne.s32.totalorder %s89, %s90
      %p102 = scmp.eq.s32.totalorder %s25, 1
      %p103 = por %p101, %p102
      %p105 = scmp.ne.s32.totalorder %s90, %s104
      %p106 = scmp.eq.s32.totalorder %s25, 0
      %p107 = por %p105, %p106
      %s109 = sadd.s32 %s108, 1
      %p112 = scmp.eq.s32.totalorder %s19, 1
      %p113 = scmp.ne.s32.totalorder %s108, %s110
      %p114 = scmp.eq.s32.totalorder %s19, 0
      %p115 = por %p113, %p114
      %p116 = scmp.ne.s32.totalorder %s108, %s110
      %p117 = scmp.eq.s32.totalorder %s24, 1
      %p118 = por %p116, %p117
      %p119 = scmp.ne.s32.totalorder %s110, %s111
      %p120 = scmp.eq.s32.totalorder %s24, 0
      %p121 = por %p119, %p120
      %p122 = scmp.ne.s32.totalorder %s110, %s111
      %p123 = scmp.eq.s32.totalorder %s25, 1
      %p124 = por %p122, %p123
      %p126 = scmp.ne.s32.totalorder %s111, %s125
      %p127 = scmp.eq.s32.totalorder %s25, 0
      %p128 = por %p126, %p127
      %s129 = ssub.s32 %s19, %s26
      %p130 = scmp.eq.s32.totalorder %s129, 0
      %s132 = sadd.s32 %s131, 1
      %s133 = scalar_select %p130, %s131, %s132
      %p136 = pneg %p130
      %p137 = scmp.eq.s32.totalorder %s19, 1
      %p138 = por %p136, %p137
      %p139 = scmp.ne.s32.totalorder %s131, %s134
      %p140 = scmp.eq.s32.totalorder %s19, 0
      %p141 = por %p139, %p140
      %p142 = scmp.ne.s32.totalorder %s131, %s134
      %p143 = scmp.eq.s32.totalorder %s24, 1
      %p144 = por %p142, %p143
      %p145 = scmp.ne.s32.totalorder %s134, %s135
      %p146 = scmp.eq.s32.totalorder %s24, 0
      %p147 = por %p145, %p146
      %p148 = scmp.ne.s32.totalorder %s134, %s135
      %p149 = scmp.eq.s32.totalorder %s25, 1
      %p150 = por %p148, %p149
      %p152 = scmp.ne.s32.totalorder %s135, %s151
      %p153 = scmp.eq.s32.totalorder %s25, 0
      %p154 = por %p152, %p153
      %p155 = scmp.le.s32.totalorder 1, %s19
      %p156 = scmp.lt.s32.totalorder %s19, 3
      %p157 = pnand %p155, %p156
      %p158 = pneg %p157
      // Predicated region
      $region9: #{tpu_custom_call.1} parent=5 // pred_check
        _
      $region10: #{tpu_custom_call.1} parent=5 // pred_check_branch
        %160 = sbr.rel (%p157) target = $region12
      $region11: #{tpu_custom_call.1} parent=5 // pred_region
        %s161 = ssub.s32 %s19, 1
        // Predicated region
        $region13: #{tpu_custom_call.1} parent=11 // pred_check
          %p162 = pneg %p100
        $region14: #{tpu_custom_call.1} parent=11 // pred_check_branch
          %164 = sbr.rel (%p162) target = $region16
        $region15: #{tpu_custom_call.1} parent=11 // pred_region
          %s166 = ssub.s32 2048, 2048
          %167 = vsyncadd [#allocation6], %s166
          %s168 = sshll.u32 [#allocation7], 4
          %s169 = int_to_ptr.vmem [resolvable:$true] %s168
          %174 = dma.hbm_to_vmem [thread:$0]  %s2, 2048, %s169, [#allocation6], 128, 128, 8
        $region16: #{tpu_custom_call.1} parent=11 // pred_fallthru
          _
        // Predicated region
        $region17: #{tpu_custom_call.1} parent=11 // pred_check
          %p175 = pneg %p121
        $region18: #{tpu_custom_call.1} parent=11 // pred_check_branch
          %177 = sbr.rel (%p175) target = $region20
        $region19: #{tpu_custom_call.1} parent=11 // pred_region
          _
        $region20: #{tpu_custom_call.1} parent=11 // pred_fallthru
          _
      $region12: #{tpu_custom_call.1} parent=5 // pred_fallthru
        _
      %p178 = scmp.lt.s32.totalorder %s19, 2
      // Predicated region
      $region21: #{tpu_custom_call.1} parent=5 // pred_check
        %p179 = pneg %p178
      $region22: #{tpu_custom_call.1} parent=5 // pred_check_branch
        %181 = sbr.rel (%p179) target = $region24
      $region23: #{tpu_custom_call.1} parent=5 // pred_region
        // Predicated region
        $region25: #{tpu_custom_call.1} parent=23 // pred_check
          %p182 = pneg %p39
        $region26: #{tpu_custom_call.1} parent=23 // pred_check_branch
          %184 = sbr.rel (%p182) target = $region28
        $region27: #{tpu_custom_call.1} parent=23 // pred_region
          %s185 = sand.u32 %s29, 1
          %s186 = scalar_lea.sflag [#allocation3], %s185
          %s187 = sand.u32 %s29, 1
          %s188 = smul.addr %s187, 32
          %s189 = scalar_lea.vmem [#allocation2], %s188
          %s190 = smul.u32 4, %s19
          %s192 = ssub.s32 512, 512
          %193 = vsyncadd %s186, %s192
          %s194 = smul.addr %s190, 128
          %s195 = scalar_lea.hbm %s0, %s194
          %s196 = sshll.u32 %s189, 4
          %s197 = int_to_ptr.vmem [resolvable:$true] %s196
          %202 = dma.hbm_to_vmem [thread:$0]  %s195, 512, %s197, %s186, 128, 128, 8
        $region28: #{tpu_custom_call.1} parent=23 // pred_fallthru
          _
        // Predicated region
        $region29: #{tpu_custom_call.1} parent=23 // pred_check
          %p203 = pneg %p73
        $region30: #{tpu_custom_call.1} parent=23 // pred_check_branch
          %205 = sbr.rel (%p203) target = $region32
        $region31: #{tpu_custom_call.1} parent=23 // pred_region
          %s206 = sand.u32 %s19, 1
          %s207 = scalar_lea.sflag [#allocation6], %s206
          %s208 = sand.u32 %s63, 1
          %s209 = smul.addr %s208, 8
          %s210 = scalar_lea.vmem [#allocation5], %s209
          %s211 = smul.u32 %s19, 4
          %s212 = ssub.s32 %s211, 1
          %p213 = scmp.gt.s32.totalorder %s212, 0
          %s214 = scalar_select %p213, %s212, 0
          %s216 = ssub.s32 128, 128
          %217 = vsyncadd %s207, %s216
          %s218 = smul.addr %s214, 128
          %s219 = scalar_lea.hbm %s1, %s218
          %s221 = sshll.u32 %s210, 4
          %s222 = int_to_ptr.vmem [resolvable:$true] %s221
          %224 = dma.hbm_to_vmem [thread:$0]  %s219, 128, %s222, %s207
        $region32: #{tpu_custom_call.1} parent=23 // pred_fallthru
          _
      $region24: #{tpu_custom_call.1} parent=5 // pred_fallthru
        _
      %p225 = scmp.le.s32.totalorder 1, %s19
      %p226 = scmp.lt.s32.totalorder %s19, 3
      %p227 = pnand %p225, %p226
      %p228 = pneg %p227
      // Predicated region
      $region33: #{tpu_custom_call.1} parent=5 // pred_check
        _
      $region34: #{tpu_custom_call.1} parent=5 // pred_check_branch
        %230 = sbr.rel (%p227) target = $region36
      $region35: #{tpu_custom_call.1} parent=5 // pred_region
        %s231 = ssub.s32 %s19, 1
        %s232 = sand.u32 %s32, 1
        %s233 = scalar_lea.sflag [#allocation3], %s232
        %s234 = sand.u32 %s32, 1
        %s235 = smul.addr %s234, 32
        %s236 = scalar_lea.vmem [#allocation2], %s235
        // Predicated region
        $region37: #{tpu_custom_call.1} parent=35 // pred_check
          %p237 = pneg %p45
        $region38: #{tpu_custom_call.1} parent=35 // pred_check_branch
          %239 = sbr.rel (%p237) target = $region40
        $region39: #{tpu_custom_call.1} parent=35 // pred_region
          %240 = dma.done %s233, 512
        $region40: #{tpu_custom_call.1} parent=35 // pred_fallthru
          _
        %s241 = sand.u32 %s24, 1
        %s242 = scalar_lea.sflag [#allocation6], %s241
        %s243 = sand.u32 %s66, 1
        %s244 = smul.addr %s243, 8
        %s245 = scalar_lea.vmem [#allocation5], %s244
        // Predicated region
        $region41: #{tpu_custom_call.1} parent=35 // pred_check
          %p246 = pneg %p79
        $region42: #{tpu_custom_call.1} parent=35 // pred_check_branch
          %248 = sbr.rel (%p246) target = $region44
        $region43: #{tpu_custom_call.1} parent=35 // pred_region
          %249 = dma.done %s242, 128
        $region44: #{tpu_custom_call.1} parent=35 // pred_fallthru
          _
        // Predicated region
        $region45: #{tpu_custom_call.1} parent=35 // pred_check
          %p250 = pneg %p100
        $region46: #{tpu_custom_call.1} parent=35 // pred_check_branch
          %252 = sbr.rel (%p250) target = $region48
        $region47: #{tpu_custom_call.1} parent=35 // pred_region
          %253 = dma.done [#allocation6], 2048
        $region48: #{tpu_custom_call.1} parent=35 // pred_fallthru
          _
        %s254 = sand.u32 %s32, 1
        %s255 = scalar_lea.sflag [#allocation3], %s254
        %s256 = sand.u32 %s32, 1
        %s257 = smul.addr %s256, 32
        %s258 = scalar_lea.vmem [#allocation2], %s257
        %p259 = pneg %p45
        %p260 = pneg %p42
        %s261 = sand.u32 %s24, 1
        %s262 = scalar_lea.sflag [#allocation6], %s261
        %s263 = sand.u32 %s66, 1
        %s264 = smul.addr %s263, 8
        %s265 = scalar_lea.vmem [#allocation5], %s264
        %p266 = pneg %p79
        %p267 = pneg %p76
        %p268 = pneg %p100
        %p269 = pneg %p97
        %p270 = pneg %p121
        %p271 = pneg %p118
        %p272 = pneg %p147
        %p273 = pneg %p144
        %s274 = sand.u32 %s134, 1
        %s275 = scalar_lea.sflag [#allocation4], %s274
        %s276 = sand.u32 %s134, 1
        %s277 = smul.addr %s276, 32
        %s278 = scalar_lea.vmem [#allocation8], %s277
        %s279 = smul.u32 4, %s24
        %s280 = smul.u32 %s24, 4
        %s281 = ssub.s32 %s280, 1
        %p282 = scmp.gt.s32.totalorder %s281, 0
        %s283 = scalar_select %p282, %s281, 0
        %s284 = smul.u32 4, %s24
        %v285 = vld [vmem:[%s236] sm:$0xff]
        %v286 = vld [vmem:[%s236 + $0x8] sm:$0xff]
        %v287 = vld [vmem:[%s236 + $0x10] sm:$0xff]
        %v288 = vld [vmem:[%s236 + $0x18] sm:$0xff]
        %v289 = vld [vmem:[%s245] sm:$0xff]
        %v290 = vld [vmem:[#allocation7] sm:$0xff]
        %v291 = vld [vmem:[#allocation7 + $0x8] sm:$0xff]
        %v292 = vld [vmem:[#allocation7 + $0x10] sm:$0xff]
        %v293 = vld [vmem:[#allocation7 + $0x18] sm:$0xff]
        %v294 = vld [vmem:[#allocation7 + $0x20] sm:$0xff]
        %v295 = vld [vmem:[#allocation7 + $0x28] sm:$0xff]
        %v296 = vld [vmem:[#allocation7 + $0x30] sm:$0xff]
        %v297 = vld [vmem:[#allocation7 + $0x38] sm:$0xff]
        %v298 = vld [vmem:[#allocation7 + $0x40] sm:$0xff]
        %v299 = vld [vmem:[#allocation7 + $0x48] sm:$0xff]
        %v300 = vld [vmem:[#allocation7 + $0x50] sm:$0xff]
        %v301 = vld [vmem:[#allocation7 + $0x58] sm:$0xff]
        %v302 = vld [vmem:[#allocation7 + $0x60] sm:$0xff]
        %v303 = vld [vmem:[#allocation7 + $0x68] sm:$0xff]
        %v304 = vld [vmem:[#allocation7 + $0x70] sm:$0xff]
        %v305 = vld [vmem:[#allocation7 + $0x78] sm:$0xff]
        %v306 = vld [vmem:[%s3] sm:$0x1]
        %307 = vmatprep.subr.mxu0 0.0
        %308 = vmatpush1.msra.mxu0 %v305
        %309 = vmatprep.subr.mxu0 0.0
        %310 = vmatpush1.msra.mxu0 %v304
        %311 = vmatprep.subr.mxu0 0.0
        %312 = vmatpush1.msra.mxu0 %v303
        %313 = vmatprep.subr.mxu0 0.0
        %314 = vmatpush1.msra.mxu0 %v302
        %315 = vmatprep.subr.mxu0 0.0
        %316 = vmatpush1.msra.mxu0 %v301
        %317 = vmatprep.subr.mxu0 0.0
        %318 = vmatpush1.msra.mxu0 %v300
        %319 = vmatprep.subr.mxu0 0.0
        %320 = vmatpush1.msra.mxu0 %v299
        %321 = vmatprep.subr.mxu0 0.0
        %322 = vmatpush1.msra.mxu0 %v298
        %323 = vmatprep.subr.mxu0 0.0
        %324 = vmatpush1.msra.mxu0 %v297
        %325 = vmatprep.subr.mxu0 0.0
        %326 = vmatpush1.msra.mxu0 %v296
        %327 = vmatprep.subr.mxu0 0.0
        %328 = vmatpush1.msra.mxu0 %v295
        %329 = vmatprep.subr.mxu0 0.0
        %330 = vmatpush1.msra.mxu0 %v294
        %331 = vmatprep.subr.mxu0 0.0
        %332 = vmatpush1.msra.mxu0 %v293
        %333 = vmatprep.subr.mxu0 0.0
        %334 = vmatpush1.msra.mxu0 %v292
        %335 = vmatprep.subr.mxu0 0.0
        %336 = vmatpush1.msra.mxu0 %v291
        %337 = vmatprep.subr.mxu0 0.0
        %338 = vmatpush1.msra.mxu0 %v290
        %339 = vmatprep.subr.mxu0 0.0
        %340 = vmatpush2.msra.mxu0 0.0
        %341 = vmatprep.subr.mxu0 0.0
        %342 = vmatpush2.msra.mxu0 0.0
        %343 = vmatprep.subr.mxu0 0.0
        %344 = vmatpush2.msra.mxu0 0.0
        %345 = vmatprep.subr.mxu0 0.0
        %346 = vmatpush2.msra.mxu0 0.0
        %347 = vmatprep.subr.mxu0 0.0
        %348 = vmatpush2.msra.mxu0 0.0
        %349 = vmatprep.subr.mxu0 0.0
        %350 = vmatpush2.msra.mxu0 0.0
        %351 = vmatprep.subr.mxu0 0.0
        %352 = vmatpush2.msra.mxu0 0.0
        %353 = vmatprep.subr.mxu0 0.0
        %354 = vmatpush2.msra.mxu0 0.0
        %355 = vmatprep.subr.mxu0 0.0
        %356 = vmatpush2.msra.mxu0 0.0
        %357 = vmatprep.subr.mxu0 0.0
        %358 = vmatpush2.msra.mxu0 0.0
        %359 = vmatprep.subr.mxu0 0.0
        %360 = vmatpush2.msra.mxu0 0.0
        %361 = vmatprep.subr.mxu0 0.0
        %362 = vmatpush2.msra.mxu0 0.0
        %363 = vmatprep.subr.mxu0 0.0
        %364 = vmatpush2.msra.mxu0 0.0
        %365 = vmatprep.subr.mxu0 0.0
        %366 = vmatpush2.msra.mxu0 0.0
        %367 = vmatprep.subr.mxu0 0.0
        %368 = vmatpush2.msra.mxu0 0.0
        %369 = vmatprep.subr.mxu0 0.0
        %370 = vmatpush2.msra.mxu0 0.0
        %371 = vmatprep.mubr.f32.mxu0 0.0
        %372 = vmatmul.mubr.f32.gmra.mxu0 %v285
        %v373 = vpop.f32.mrf.mxu0
        %v374 = vadd.f32 0.0, %v373
        %v375 = vpop.f32.mrf.mxu0
        %376 = vmatprep.mubr.f32.mxu0 0.0
        %377 = vmatmul.mubr.f32.gmra.mxu0 %v286
        %v378 = vpop.f32.mrf.mxu0
        %v379 = vadd.f32 0.0, %v378
        %v380 = vpop.f32.mrf.mxu0
        %381 = vmatprep.mubr.f32.mxu0 0.0
        %382 = vmatmul.mubr.f32.gmra.mxu0 %v287
        %v383 = vpop.f32.mrf.mxu0
        %v384 = vadd.f32 0.0, %v383
        %v385 = vpop.f32.mrf.mxu0
        %386 = vmatprep.mubr.f32.mxu0 0.0
        %387 = vmatmul.mubr.f32.gmra.mxu0 %v288
        %v388 = vpop.f32.mrf.mxu0
        %v389 = vadd.f32 0.0, %v388
        %v390 = vpop.f32.mrf.mxu0
        %391 = vdwg.mxu0
        %v392 = vtanh.pop %v374
        %v393 = vtanh.pop %v379
        %v394 = vtanh.pop %v384
        %v395 = vtanh.pop %v389
        %v397 = vlaneseq
        %v398 = vshrl.u32 %v397, 7
        %v399 = vsub.s32 0, %v398
        %v400 = vrot.slane %v306, %v399
        %v402 = vmul.f32 %v392, %v400
        %v403 = vmul.f32 %v393, %v400
        %v404 = vmul.f32 %v394, %v400
        %v405 = vmul.f32 %v395, %v400
        %406 = vadd.xlane.f32.xlu0 %v402
        %v407 = vpop.xlane.xlu0 %406
        %408 = vadd.xlane.f32.xlu0 %v403
        %v409 = vpop.xlane.xlu0 %408
        %410 = vadd.xlane.f32.xlu0 %v404
        %v411 = vpop.xlane.xlu0 %410
        %412 = vadd.xlane.f32.xlu0 %v405
        %v413 = vpop.xlane.xlu0 %412
        %414 = vmatprep.subr.mxu0 0.0
        %415 = vmatpush1.msra.mxu0 %v305
        %416 = vmatprep.subr.mxu0 0.0
        %417 = vmatpush1.msra.mxu0 %v304
        %418 = vmatprep.subr.mxu0 0.0
        %419 = vmatpush1.msra.mxu0 %v303
        %420 = vmatprep.subr.mxu0 0.0
        %421 = vmatpush1.msra.mxu0 %v302
        %422 = vmatprep.subr.mxu0 0.0
        %423 = vmatpush1.msra.mxu0 %v301
        %424 = vmatprep.subr.mxu0 0.0
        %425 = vmatpush1.msra.mxu0 %v300
        %426 = vmatprep.subr.mxu0 0.0
        %427 = vmatpush1.msra.mxu0 %v299
        %428 = vmatprep.subr.mxu0 0.0
        %429 = vmatpush1.msra.mxu0 %v298
        %430 = vmatprep.subr.mxu0 0.0
        %431 = vmatpush1.msra.mxu0 %v297
        %432 = vmatprep.subr.mxu0 0.0
        %433 = vmatpush1.msra.mxu0 %v296
        %434 = vmatprep.subr.mxu0 0.0
        %435 = vmatpush1.msra.mxu0 %v295
        %436 = vmatprep.subr.mxu0 0.0
        %437 = vmatpush1.msra.mxu0 %v294
        %438 = vmatprep.subr.mxu0 0.0
        %439 = vmatpush1.msra.mxu0 %v293
        %440 = vmatprep.subr.mxu0 0.0
        %441 = vmatpush1.msra.mxu0 %v292
        %442 = vmatprep.subr.mxu0 0.0
        %443 = vmatpush1.msra.mxu0 %v291
        %444 = vmatprep.subr.mxu0 0.0
        %445 = vmatpush1.msra.mxu0 %v290
        %446 = vmatprep.subr.mxu0 0.0
        %447 = vmatpush2.msra.mxu0 0.0
        %448 = vmatprep.subr.mxu0 0.0
        %449 = vmatpush2.msra.mxu0 0.0
        %450 = vmatprep.subr.mxu0 0.0
        %451 = vmatpush2.msra.mxu0 0.0
        %452 = vmatprep.subr.mxu0 0.0
        %453 = vmatpush2.msra.mxu0 0.0
        %454 = vmatprep.subr.mxu0 0.0
        %455 = vmatpush2.msra.mxu0 0.0
        %456 = vmatprep.subr.mxu0 0.0
        %457 = vmatpush2.msra.mxu0 0.0
        %458 = vmatprep.subr.mxu0 0.0
        %459 = vmatpush2.msra.mxu0 0.0
        %460 = vmatprep.subr.mxu0 0.0
        %461 = vmatpush2.msra.mxu0 0.0
        %462 = vmatprep.subr.mxu0 0.0
        %463 = vmatpush2.msra.mxu0 0.0
        %464 = vmatprep.subr.mxu0 0.0
        %465 = vmatpush2.msra.mxu0 0.0
        %466 = vmatprep.subr.mxu0 0.0
        %467 = vmatpush2.msra.mxu0 0.0
        %468 = vmatprep.subr.mxu0 0.0
        %469 = vmatpush2.msra.mxu0 0.0
        %470 = vmatprep.subr.mxu0 0.0
        %471 = vmatpush2.msra.mxu0 0.0
        %472 = vmatprep.subr.mxu0 0.0
        %473 = vmatpush2.msra.mxu0 0.0
        %474 = vmatprep.subr.mxu0 0.0
        %475 = vmatpush2.msra.mxu0 0.0
        %476 = vmatprep.subr.mxu0 0.0
        %477 = vmatpush2.msra.mxu0 0.0
        %478 = vmatprep.mubr.f32.mxu0 0.0
        %479 = vmatmul.mubr.f32.gmra.mxu0 %v289
        %v480 = vpop.f32.mrf.mxu0
        %v481 = vadd.f32 0.0, %v480
        %v482 = vpop.f32.mrf.mxu0
        %483 = vdwg.mxu0
        %v484 = vtanh.pop %v481
        %v485 = vmul.f32 %v484, %v400
        %486 = vadd.xlane.f32.xlu0 %v485
        %v487 = vpop.xlane.xlu0 %486
        %vm493 = vcmask 1040384
        %v494 = vrot.slane %v289, 7
        %v495 = vrot.slane %v285, 7
        %v496 = vsel %vm493, %v494, %v495
        %v497 = vrot.slane %v286, 7
        %v498 = vsel %vm493, %v495, %v497
        %v499 = vrot.slane %v287, 7
        %v500 = vsel %vm493, %v497, %v499
        %v501 = vrot.slane %v288, 7
        %v502 = vsel %vm493, %v499, %v501
        %v508 = vadd.f32 %v289, %v494
        %v509 = vadd.f32 %v285, %v496
        %v510 = vadd.f32 %v286, %v498
        %v511 = vadd.f32 %v287, %v500
        %v512 = vadd.f32 %v288, %v502
        %vm513 = vcmask 1041408
        %v514 = vrot.slane %v289, 6
        %v515 = vrot.slane %v285, 6
        %v516 = vsel %vm513, %v514, %v515
        %v517 = vrot.slane %v286, 6
        %v518 = vsel %vm513, %v515, %v517
        %v519 = vrot.slane %v287, 6
        %v520 = vsel %vm513, %v517, %v519
        %v521 = vrot.slane %v288, 6
        %v522 = vsel %vm513, %v519, %v521
        %v528 = vadd.f32 %v508, %v514
        %v529 = vadd.f32 %v509, %v516
        %v530 = vadd.f32 %v510, %v518
        %v531 = vadd.f32 %v511, %v520
        %v532 = vadd.f32 %v512, %v522
        %v538 = vrot.slane %v487, 7
        %v539 = vrot.slane %v407, 7
        %v540 = vsel %vm493, %v538, %v539
        %v541 = vrot.slane %v409, 7
        %v542 = vsel %vm493, %v539, %v541
        %v543 = vrot.slane %v411, 7
        %v544 = vsel %vm493, %v541, %v543
        %v545 = vrot.slane %v413, 7
        %v546 = vsel %vm493, %v543, %v545
        %v552 = vmax.f32 %v487, %v538
        %v553 = vmax.f32 %v407, %v540
        %v554 = vmax.f32 %v409, %v542
        %v555 = vmax.f32 %v411, %v544
        %v556 = vmax.f32 %v413, %v546
        %v557 = vrot.slane %v487, 6
        %v558 = vrot.slane %v407, 6
        %v559 = vsel %vm513, %v557, %v558
        %v560 = vrot.slane %v409, 6
        %v561 = vsel %vm513, %v558, %v560
        %v562 = vrot.slane %v411, 6
        %v563 = vsel %vm513, %v560, %v562
        %v564 = vrot.slane %v413, 6
        %v565 = vsel %vm513, %v562, %v564
        %v571 = vmax.f32 %v552, %v557
        %v572 = vmax.f32 %v553, %v559
        %v573 = vmax.f32 %v554, %v561
        %v574 = vmax.f32 %v555, %v563
        %v575 = vmax.f32 %v556, %v565
        %v576 = vsub.f32 %v487, %v571
        %v577 = vsub.f32 %v407, %v572
        %v578 = vsub.f32 %v409, %v573
        %v579 = vsub.f32 %v411, %v574
        %v580 = vsub.f32 %v413, %v575
        %v581 = vmul.f32 %v576, 1.442695
        %v582 = vpow.pop %v581
        %v583 = vmul.f32 %v577, 1.442695
        %v584 = vpow.pop %v583
        %v585 = vmul.f32 %v578, 1.442695
        %v586 = vpow.pop %v585
        %v587 = vmul.f32 %v579, 1.442695
        %v588 = vpow.pop %v587
        %v589 = vmul.f32 %v580, 1.442695
        %v590 = vpow.pop %v589
        %vm596 = vcmask 1046528
        %v597 = vrot.slane %v571, 1
        %v598 = vrot.slane %v572, 1
        %v599 = vsel %vm596, %v597, %v598
        %v600 = vrot.slane %v573, 1
        %v601 = vsel %vm596, %v598, %v600
        %v602 = vrot.slane %v574, 1
        %v603 = vsel %vm596, %v600, %v602
        %v604 = vrot.slane %v575, 1
        %v605 = vsel %vm596, %v602, %v604
        %v611 = vsub.f32 %v487, %v599
        %v612 = vsub.f32 %v407, %v601
        %v613 = vsub.f32 %v409, %v603
        %v614 = vsub.f32 %v411, %v605
        %v615 = vsub.f32 %v413, %v604
        %v616 = vmul.f32 %v611, 1.442695
        %v617 = vpow.pop %v616
        %v618 = vmul.f32 %v612, 1.442695
        %v619 = vpow.pop %v618
        %v620 = vmul.f32 %v613, 1.442695
        %v621 = vpow.pop %v620
        %v622 = vmul.f32 %v614, 1.442695
        %v623 = vpow.pop %v622
        %v624 = vmul.f32 %v615, 1.442695
        %v625 = vpow.pop %v624
        %v631 = vrot.slane %v617, 7
        %v632 = vrot.slane %v619, 7
        %v633 = vsel %vm493, %v631, %v632
        %v634 = vrot.slane %v621, 7
        %v635 = vsel %vm493, %v632, %v634
        %v636 = vrot.slane %v623, 7
        %v637 = vsel %vm493, %v634, %v636
        %v638 = vrot.slane %v625, 7
        %v639 = vsel %vm493, %v636, %v638
        %v645 = vadd.f32 %v582, %v631
        %v646 = vadd.f32 %v584, %v633
        %v647 = vadd.f32 %v586, %v635
        %v648 = vadd.f32 %v588, %v637
        %v649 = vadd.f32 %v590, %v639
        %vm650 = vcmask 1045504
        %v651 = vrot.slane %v571, 2
        %v652 = vrot.slane %v572, 2
        %v653 = vsel %vm650, %v651, %v652
        %v654 = vrot.slane %v573, 2
        %v655 = vsel %vm650, %v652, %v654
        %v656 = vrot.slane %v574, 2
        %v657 = vsel %vm650, %v654, %v656
        %v658 = vrot.slane %v575, 2
        %v659 = vsel %vm650, %v656, %v658
        %v665 = vsub.f32 %v487, %v653
        %v666 = vsub.f32 %v407, %v655
        %v667 = vsub.f32 %v409, %v657
        %v668 = vsub.f32 %v411, %v659
        %v669 = vsub.f32 %v413, %v658
        %v670 = vmul.f32 %v665, 1.442695
        %v671 = vpow.pop %v670
        %v672 = vmul.f32 %v666, 1.442695
        %v673 = vpow.pop %v672
        %v674 = vmul.f32 %v667, 1.442695
        %v675 = vpow.pop %v674
        %v676 = vmul.f32 %v668, 1.442695
        %v677 = vpow.pop %v676
        %v678 = vmul.f32 %v669, 1.442695
        %v679 = vpow.pop %v678
        %v685 = vrot.slane %v671, 6
        %v686 = vrot.slane %v673, 6
        %v687 = vsel %vm513, %v685, %v686
        %v688 = vrot.slane %v675, 6
        %v689 = vsel %vm513, %v686, %v688
        %v690 = vrot.slane %v677, 6
        %v691 = vsel %vm513, %v688, %v690
        %v692 = vrot.slane %v679, 6
        %v693 = vsel %vm513, %v690, %v692
        %v699 = vadd.f32 %v645, %v685
        %v700 = vadd.f32 %v646, %v687
        %v701 = vadd.f32 %v647, %v689
        %v702 = vadd.f32 %v648, %v691
        %v703 = vadd.f32 %v649, %v693
        %v704 = vrcp.pop %v699
        %v705 = vrcp.pop %v700
        %v706 = vrcp.pop %v701
        %v707 = vrcp.pop %v702
        %v708 = vrcp.pop %v703
        %v714 = vrot.slane %v704, 2
        %v715 = vrot.slane %v705, 2
        %v716 = vsel %vm650, %v714, %v715
        %v717 = vrot.slane %v706, 2
        %v718 = vsel %vm650, %v715, %v717
        %v719 = vrot.slane %v707, 2
        %v720 = vsel %vm650, %v717, %v719
        %v721 = vrot.slane %v708, 2
        %v722 = vsel %vm650, %v719, %v721
        %v728 = vmul.f32 %v671, %v716
        %v729 = vmul.f32 %v673, %v718
        %v730 = vmul.f32 %v675, %v720
        %v731 = vmul.f32 %v677, %v722
        %v732 = vmul.f32 %v679, %v721
        %734 = vset.pattern.permute.xlu0 0
        %735 = vperm.xlu0 %734, %v728
        %v736 = vpop.permute.xlu0 %735
        %739 = vset.pattern.permute.xlu0 0
        %740 = vperm.xlu0 %739, %v729
        %v741 = vpop.permute.xlu0 %740
        %744 = vset.pattern.permute.xlu0 0
        %745 = vperm.xlu0 %744, %v730
        %v746 = vpop.permute.xlu0 %745
        %749 = vset.pattern.permute.xlu0 0
        %750 = vperm.xlu0 %749, %v731
        %v751 = vpop.permute.xlu0 %750
        %754 = vset.pattern.permute.xlu0 0
        %755 = vperm.xlu0 %754, %v732
        %v756 = vpop.permute.xlu0 %755
        %v763 = vrot.slane %v528, 2
        %v764 = vrot.slane %v529, 2
        %v765 = vsel %vm650, %v763, %v764
        %v766 = vrot.slane %v530, 2
        %v767 = vsel %vm650, %v764, %v766
        %v768 = vrot.slane %v531, 2
        %v769 = vsel %vm650, %v766, %v768
        %v770 = vrot.slane %v532, 2
        %v771 = vsel %vm650, %v768, %v770
        %v777 = vmul.f32 %v736, %v765
        %v778 = vmul.f32 %v741, %v767
        %v779 = vmul.f32 %v746, %v769
        %v780 = vmul.f32 %v751, %v771
        %v781 = vmul.f32 %v756, %v770
        %v782 = vlaneseq
        %v783 = vshrl.u32 %v782, 7
        %v784 = vadd.s32 %v783, 8
        %v785 = vadd.s32 %v783, 16
        %v786 = vadd.s32 %v783, 24
        %s787 = smul.u32 %s24, 32
        %v788 = vstv %s787
        %v789 = vadd.s32 %v783, %v788
        %v790 = vadd.s32 %v784, %v788
        %v791 = vadd.s32 %v785, %v788
        %v792 = vadd.s32 %v786, %v788
        %vm793 = vcmp.lt.s32.totalorder %v789, 3
        %vm794 = vcmp.lt.s32.totalorder %v790, 3
        %vm795 = vcmp.lt.s32.totalorder %v791, 3
        %vm796 = vcmp.lt.s32.totalorder %v792, 3
        %vm802 = vcmask 1042432
        %v803 = vrot.slane %v777, 5
        %v804 = vrot.slane %v778, 5
        %v805 = vsel %vm802, %v803, %v804
        %v806 = vrot.slane %v779, 5
        %v807 = vsel %vm802, %v804, %v806
        %v808 = vrot.slane %v780, 5
        %v809 = vsel %vm802, %v806, %v808
        %v810 = vrot.slane %v781, 5
        %v811 = vsel %vm802, %v808, %v810
        %v816 = vsel %vm793, %v285, %v805
        %v817 = vsel %vm794, %v286, %v807
        %v818 = vsel %vm795, %v287, %v809
        %v819 = vsel %vm796, %v288, %v811
        %820 = vst [vmem:[%s278] sm:$0xff] %v816
        %821 = vst [vmem:[%s278 + $0x8] sm:$0xff] %v817
        %822 = vst [vmem:[%s278 + $0x10] sm:$0xff] %v818
        %823 = vst [vmem:[%s278 + $0x18] sm:$0xff] %v819
        %s824 = sand.u32 %s134, 1
        %s825 = scalar_lea.sflag [#allocation4], %s824
        %s826 = sand.u32 %s134, 1
        %s827 = smul.addr %s826, 32
        %s828 = scalar_lea.vmem [#allocation8], %s827
        // Predicated region
        $region49: #{tpu_custom_call.1} parent=35 // pred_check
          %p829 = pneg %p144
        $region50: #{tpu_custom_call.1} parent=35 // pred_check_branch
          %831 = sbr.rel (%p829) target = $region52
        $region51: #{tpu_custom_call.1} parent=35 // pred_region
          %s832 = smul.u32 4, %s24
          %s834 = ssub.s32 512, 512
          %835 = vsyncadd %s825, %s834
          %s836 = smul.addr %s832, 128
          %s837 = scalar_lea.hbm %s4, %s836
          %s838 = sshll.u32 %s828, 4
          %s839 = int_to_ptr.vmem [resolvable:$true] %s838
          %844 = dma.vmem_to_hbm [thread:$0]  %s839, 512, %s837, %s825, 128, 128, 8
        $region52: #{tpu_custom_call.1} parent=35 // pred_fallthru
          _
      $region36: #{tpu_custom_call.1} parent=5 // pred_fallthru
        _
      %p845 = scmp.le.s32.totalorder 2, %s19
      // Predicated region
      $region53: #{tpu_custom_call.1} parent=5 // pred_check
        %p846 = pneg %p845
      $region54: #{tpu_custom_call.1} parent=5 // pred_check_branch
        %848 = sbr.rel (%p846) target = $region56
      $region55: #{tpu_custom_call.1} parent=5 // pred_region
        %s849 = ssub.s32 %s19, 2
        // Predicated region
        $region57: #{tpu_custom_call.1} parent=55 // pred_check
          %p850 = pneg %p150
        $region58: #{tpu_custom_call.1} parent=55 // pred_check_branch
          %852 = sbr.rel (%p850) target = $region60
        $region59: #{tpu_custom_call.1} parent=55 // pred_region
          %s853 = sand.u32 %s135, 1
          %s854 = scalar_lea.sflag [#allocation4], %s853
          %s855 = sand.u32 %s135, 1
          %s856 = smul.addr %s855, 32
          %s857 = scalar_lea.vmem [#allocation8], %s856
          %858 = dma.done %s854, 512
        $region60: #{tpu_custom_call.1} parent=55 // pred_fallthru
          _
      $region56: #{tpu_custom_call.1} parent=5 // pred_fallthru
        _
    $region6: #{tpu_custom_call.1} parent=1 // loop_footer
      %s23 = sadd.s32 1, %s19
    $region7: #{tpu_custom_call.1} parent=1 // loop_footer_branch
      %18 = sbr.rel target = $region3
    $region8: #{tpu_custom_call.1} parent=1 // loop_exit
      _
    %859 = vsyncpa [#allocation3], 1
    %s860 = scalar_lea.sflag [#allocation3], 1
    %861 = vsyncpa %s860, 1
    %862 = vsyncpa [#allocation6], 1
    %s863 = scalar_lea.sflag [#allocation6], 1
    %864 = vsyncpa %s863, 1
    %865 = vsyncpa [#allocation4], 1
    %s866 = scalar_lea.sflag [#allocation4], 1
    %867 = vsyncpa %s866, 1

</llo_original>
